<compile_context>
chip_gen: v6e
topology: v6e:2x2x1
jax: 0.10.0
libtpu: 0.0.40
codegen_flags: <defaults>
</compile_context>

<pallas_src>
import functools
import math

import jax
import jax.numpy as jnp
from jax import lax
from jax.experimental import pallas as pl
from jax.experimental.pallas import tpu as pltpu


LN_EPS = 1e-6                      # matches LayerNorm(..., eps=1e-06) in the module
_VMEM_LIMIT = 48 * 1024 * 1024     # < 64 MiB physical on v7x, fine on v5e/v6e
_INV_SQRT2 = 0.7071067811865476


# ---------------------------------------------------------------------------
# helpers
# ---------------------------------------------------------------------------
def _pick_tile(n, prefs=(256, 128, 64, 32, 16, 8)):
    """Largest preferred tile dividing n; falls back to a single block."""
    for p in prefs:
        if n % p == 0:
            return p
    return n


def _round_up(n, m):
    return ((n + m - 1) // m) * m


def _layernorm(x, gamma, beta, eps):
    mean = jnp.mean(x, axis=-1, keepdims=True)
    xc = x - mean
    var = jnp.mean(xc * xc, axis=-1, keepdims=True)
    return xc * lax.rsqrt(var + eps) * gamma + beta


def _erf_approx(z):
    # Abramowitz & Stegun 7.1.26 rational approximation, |err| <= 1.5e-7.
    # Keeps the exact (erf-based) GELU inside the kernel using only ops that
    # lower cleanly in Mosaic (exp goes to the EUP slot, idle during matmuls).
    a1, a2, a3, a4, a5 = (0.254829592, -0.284496736, 1.421413741,
                          -1.453152027, 1.061405429)
    p = 0.3275911
    az = jnp.abs(z)
    t = 1.0 / (1.0 + p * az)
    poly = ((((a5 * t + a4) * t + a3) * t + a2) * t + a1) * t
    y = 1.0 - poly * jnp.exp(-az * az)
    return jnp.where(z >= 0, y, -y)


def _gelu_exact(x):
    return 0.5 * x * (1.0 + _erf_approx(x * _INV_SQRT2))


# ---------------------------------------------------------------------------
# 1) Patch-embedding kernel (stride==kernel Conv2d as a matmul)
# ---------------------------------------------------------------------------
def _patch_embed_kernel(xp_ref, w_ref, pos_ref, o_ref):
    # xp_ref : (1, TN, D)   patches for one (batch, patch-tile) grid point
    # w_ref  : (D, H)       flattened conv weight (resident across the grid)
    # pos_ref: (1, TN, H)   patch-token position embeddings + folded conv bias
    emb = jnp.dot(xp_ref[0], w_ref[...], preferred_element_type=jnp.float32)
    o_ref[0] = (emb + pos_ref[0]).astype(o_ref.dtype)


def embeddings_forward(x, conv_w, conv_b, cls_token, pos_emb, patch_size,
                       *, matmul_dtype=jnp.float32):
    """x: (B, C, H, W) NCHW.  Returns (B, n_patches + 1, hidden) float32."""
    B, C, H, W = x.shape
    P = patch_size
    hidden = conv_w.shape[0]
    gh, gw = H // P, W // P
    n_patches = gh * gw
    patch_dim = C * P * P

    # Patch-extraction glue (candidate for XLA input fusion into the DMA).
    xp = x.reshape(B, C, gh, P, gw, P)
    xp = xp.transpose(0, 2, 4, 1, 3, 5).reshape(B, n_patches, patch_dim)
    xp = xp.astype(matmul_dtype)

    w_mat = conv_w.reshape(hidden, patch_dim).T.astype(matmul_dtype)
    # Fold the conv bias into the patch-token slice of the position embedding.
    pos_pb = (pos_emb[:, 1:, :]
              + conv_b.reshape(1, 1, hidden)).astype(jnp.float32)

    tn = _pick_tile(n_patches)
    grid = (B, n_patches // tn)

    patch_tokens = pl.pallas_call(
        _patch_embed_kernel,
        out_shape=jax.ShapeDtypeStruct((B, n_patches, hidden), jnp.float32),
        grid=grid,
        in_specs=[
            pl.BlockSpec((1, tn, patch_dim), lambda b, t: (b, t, 0)),
            pl.BlockSpec((patch_dim, hidden), lambda b, t: (0, 0)),
            pl.BlockSpec((1, tn, hidden), lambda b, t: (0, t, 0)),
        ],
        out_specs=pl.BlockSpec((1, tn, hidden), lambda b, t: (b, t, 0)),
        compiler_params=pltpu.CompilerParams(
            dimension_semantics=("parallel", "parallel"),
            vmem_limit_bytes=_VMEM_LIMIT,
            allow_input_fusion=[True, False, False],
        ),
    )(xp, w_mat, pos_pb)

    # cls row computed once outside so the big patch-token store in the kernel
    # stays sublane-aligned at row 0.
    cls_row = jnp.broadcast_to(cls_token + pos_emb[:, :1, :], (B, 1, hidden))
    # TODO(synk): dropout is identity in eval mode; training-mode dropout
    # (pltpu.prng_random_bits masking) is not applied.
    return jnp.concatenate([cls_row, patch_tokens], axis=1)


# ---------------------------------------------------------------------------
# 2) Fused attention block kernel:
#    out = x + Wo^T( all-heads-attention( LN(x) @ Wqkv + bqkv ) ) + bo
# ---------------------------------------------------------------------------
def _attn_block_kernel(x_ref, g_ref, b_ref, wqkv_ref, bqkv_ref, wo_ref, bo_ref,
                       o_ref, qkv_ref, *, num_heads, seq_real, scale,
                       matmul_dtype):
    x = x_ref[0]                                              # (S_pad, H) f32
    xn = _layernorm(x, g_ref[...], b_ref[...], LN_EPS)
    # Fused QKV projection; result parked in a VMEM scratch so per-head
    # slices are plain static ref loads.
    qkv_ref[...] = jnp.dot(xn.astype(matmul_dtype), wqkv_ref[...],
                           preferred_element_type=jnp.float32) + bqkv_ref[...]

    s_pad, h = x.shape
    hd = h // num_heads
    # Padded key tokens must not receive softmax mass.
    key_mask = lax.broadcasted_iota(jnp.int32, (1, s_pad), 1) < seq_real

    out = x + bo_ref[...]                                     # residual + bias
    for n in range(num_heads):
        q_h = qkv_ref[:, n * hd:(n + 1) * hd]                 # (S_pad, hd)
        k_h = qkv_ref[:, h + n * hd:h + (n + 1) * hd]
        v_h = qkv_ref[:, 2 * h + n * hd:2 * h + (n + 1) * hd]
        # q @ k^T handled by the MXU directly (no materialized transpose).
        s = lax.dot_general(q_h.astype(matmul_dtype), k_h.astype(matmul_dtype),
                            (((1,), (1,)), ((), ())),
                            preferred_element_type=jnp.float32) * scale
        s = jnp.where(key_mask, s, -1e30)
        m = jnp.max(s, axis=-1, keepdims=True)
        p = jnp.exp(s - m)
        d = jnp.sum(p, axis=-1, keepdims=True)
        r = pl.reciprocal(d, approx=True)
        r = r * (2.0 - d * r)            # one Newton step -> ~f32-exact, cheap
        p = p * r
        # TODO(synk): attention dropout is identity in eval mode.
        ctx_h = jnp.dot(p.astype(matmul_dtype), v_h.astype(matmul_dtype),
                        preferred_element_type=jnp.float32)   # (S_pad, hd)
        # concat_h(ctx_h) @ Wo == sum_h ctx_h @ Wo[h*hd:(h+1)*hd, :]
        out = out + jnp.dot(ctx_h.astype(matmul_dtype),
                            wo_ref[n * hd:(n + 1) * hd, :],
                            preferred_element_type=jnp.float32)
    o_ref[0] = out.astype(o_ref.dtype)


def attention_block(x3d, layer, *, num_heads, seq_real, matmul_dtype):
    B, S_pad, H = x3d.shape
    hd = H // num_heads
    kernel = functools.partial(
        _attn_block_kernel, num_heads=num_heads, seq_real=seq_real,
        scale=1.0 / math.sqrt(hd), matmul_dtype=matmul_dtype)
    const2 = lambda b: (0, 0)
    return pl.pallas_call(
        kernel,
        out_shape=jax.ShapeDtypeStruct((B, S_pad, H), jnp.float32),
        grid=(B,),
        in_specs=[
            pl.BlockSpec((1, S_pad, H), lambda b: (b, 0, 0)),
            pl.BlockSpec((1, H), const2),
            pl.BlockSpec((1, H), const2),
            pl.BlockSpec((H, 3 * H), const2),
            pl.BlockSpec((1, 3 * H), const2),
            pl.BlockSpec((H, H), const2),
            pl.BlockSpec((1, H), const2),
        ],
        out_specs=pl.BlockSpec((1, S_pad, H), lambda b: (b, 0, 0)),
        scratch_shapes=[pltpu.VMEM((S_pad, 3 * H), jnp.float32)],
        compiler_params=pltpu.CompilerParams(
            dimension_semantics=("parallel",),
            vmem_limit_bytes=_VMEM_LIMIT),
    )(x3d, layer["ln1_g"], layer["ln1_b"], layer["wqkv"], layer["bqkv"],
      layer["wo_t"], layer["bo"])


# ---------------------------------------------------------------------------
# 3) Fused MLP block kernel: out = x + GELU(LN(x) @ W1 + b1) @ W2 + b2
# ---------------------------------------------------------------------------
def _mlp_block_kernel(x_ref, g_ref, b_ref, w1_ref, b1_ref, w2_ref, b2_ref,
                      o_ref, *, matmul_dtype):
    x = x_ref[...]                                            # (tr, H) f32
    xn = _layernorm(x, g_ref[...], b_ref[...], LN_EPS)
    h1 = jnp.dot(xn.astype(matmul_dtype), w1_ref[...],
                 preferred_element_type=jnp.float32) + b1_ref[...]
    h1 = _gelu_exact(h1)                                      # f32 epilogue
    # TODO(synk): MLP dropout is identity in eval mode.
    out = jnp.dot(h1.astype(matmul_dtype), w2_ref[...],
                  preferred_element_type=jnp.float32) + b2_ref[...] + x
    o_ref[...] = out.astype(o_ref.dtype)


def mlp_block(x2d, layer, *, matmul_dtype):
    T, H = x2d.shape
    M = layer["w1_t"].shape[1]
    tr = _pick_tile(T)
    kernel = functools.partial(_mlp_block_kernel, matmul_dtype=matmul_dtype)
    const2 = lambda i: (0, 0)
    return pl.pallas_call(
        kernel,
        out_shape=jax.ShapeDtypeStruct((T, H), jnp.float32),
        grid=(T // tr,),
        in_specs=[
            pl.BlockSpec((tr, H), lambda i: (i, 0)),
            pl.BlockSpec((1, H), const2),
            pl.BlockSpec((1, H), const2),
            pl.BlockSpec((H, M), const2),
            pl.BlockSpec((1, M), const2),
            pl.BlockSpec((M, H), const2),
            pl.BlockSpec((1, H), const2),
        ],
        out_specs=pl.BlockSpec((tr, H), lambda i: (i, 0)),
        compiler_params=pltpu.CompilerParams(
            dimension_semantics=("parallel",),
            vmem_limit_bytes=_VMEM_LIMIT),
    )(x2d, layer["ln2_g"], layer["ln2_b"], layer["w1_t"], layer["b1"],
      layer["w2_t"], layer["b2"])


# ---------------------------------------------------------------------------
# 4) Final encoder LayerNorm kernel
# ---------------------------------------------------------------------------
def _layernorm_kernel(x_ref, g_ref, b_ref, o_ref):
    o_ref[...] = _layernorm(x_ref[...], g_ref[...], b_ref[...],
                            LN_EPS).astype(o_ref.dtype)


def layernorm(x2d, gamma, beta):
    T, H = x2d.shape
    tr = _pick_tile(T)
    return pl.pallas_call(
        _layernorm_kernel,
        out_shape=jax.ShapeDtypeStruct((T, H), jnp.float32),
        grid=(T // tr,),
        in_specs=[
            pl.BlockSpec((tr, H), lambda i: (i, 0)),
            pl.BlockSpec((1, H), lambda i: (0, 0)),
            pl.BlockSpec((1, H), lambda i: (0, 0)),
        ],
        out_specs=pl.BlockSpec((tr, H), lambda i: (i, 0)),
        compiler_params=pltpu.CompilerParams(
            dimension_semantics=("parallel",)),
    )(x2d, gamma, beta)


# ---------------------------------------------------------------------------
# Parameter preparation (done ONCE, outside the forward)
# ---------------------------------------------------------------------------
def prepare_params(params, *, matmul_dtype=jnp.float32):
    """Fold ChannelImportance scales into the adjacent Linear weights (exact:
    a diagonal input scale commutes into the weight), transpose to (in, out),
    concatenate Q/K/V into one (H, 3H) weight and cast weight matrices to
    matmul_dtype.  Biases / LN params stay f32 (f32 epilogues)."""
    h = params["conv_w"].shape[0]
    prep = {
        "conv_w": params["conv_w"], "conv_b": params["conv_b"],
        "cls_token": params["cls_token"], "pos_emb": params["pos_emb"],
        "encoder_norm_g": params["encoder_norm_g"].reshape(1, h),
        "encoder_norm_b": params["encoder_norm_b"].reshape(1, h),
        "layers": [],
    }
    for layer in params["layers"]:
        # TODO(synk): the prune=True path (global kthvalue threshold masks) is
        # data-dependent and not implemented; this mirrors prune=False.
        wq = (layer["wq"] * layer["ci"][None, :]).T
        wk = (layer["wk"] * layer["ci"][None, :]).T
        wv = (layer["wv"] * layer["ci"][None, :]).T
        wqkv = jnp.concatenate([wq, wk, wv], axis=1).astype(matmul_dtype)
        bqkv = jnp.concatenate(
            [layer["bq"], layer["bk"], layer["bv"]]).reshape(1, 3 * h)
        wo_t = (layer["wo"] * layer["cci"][None, :]).T.astype(matmul_dtype)
        w1_t = (layer["w1"] * layer["mi1"][None, :]).T.astype(matmul_dtype)
        w2_t = (layer["w2"] * layer["mi2"][None, :]).T.astype(matmul_dtype)
        m = w1_t.shape[1]
        prep["layers"].append({
            "ln1_g": layer["ln1_g"].reshape(1, h),
            "ln1_b": layer["ln1_b"].reshape(1, h),
            "ln2_g": layer["ln2_g"].reshape(1, h),
            "ln2_b": layer["ln2_b"].reshape(1, h),
            "wqkv": wqkv, "bqkv": bqkv.astype(jnp.float32),
            "wo_t": wo_t, "bo": layer["bo"].reshape(1, h),
            "w1_t": w1_t, "b1": layer["b1"].reshape(1, m),
            "w2_t": w2_t, "b2": layer["b2"].reshape(1, h),
        })
    return prep


# ---------------------------------------------------------------------------
# Full Transformer forward
# ---------------------------------------------------------------------------
def transformer_forward(x, prep, *, patch_size, num_heads,
                        matmul_dtype=jnp.float32):
    """Mirrors Transformer.forward (eval, prune=False, visualize=False).
    Returns (encoded, attn_weights); attn_weights is [] (visualize=False)."""
    emb = embeddings_forward(x, prep["conv_w"], prep["conv_b"],
                             prep["cls_token"], prep["pos_emb"], patch_size,
                             matmul_dtype=matmul_dtype)
    b, s, h = emb.shape
    s_pad = _round_up(s, 8)            # sublane-aligned token axis
    if s_pad != s:
        emb = jnp.pad(emb, ((0, 0), (0, s_pad - s), (0, 0)))

    hidden = emb                        # (B, S_pad, H)
    for layer in prep["layers"]:
        hidden = attention_block(hidden, layer, num_heads=num_heads,
                                 seq_real=s, matmul_dtype=matmul_dtype)
        hidden = mlp_block(hidden.reshape(b * s_pad, h), layer,
                           matmul_dtype=matmul_dtype).reshape(b, s_pad, h)

    encoded = layernorm(hidden.reshape(b * s_pad, h),
                        prep["encoder_norm_g"], prep["encoder_norm_b"])
    encoded = encoded.reshape(b, s_pad, h)[:, :s, :]
    attn_weights = []                   # TODO(synk): visualize=True not impl.
    return encoded, attn_weights


# ---------------------------------------------------------------------------
# Pure-JAX reference (mirrors the PyTorch forward op-for-op, eval mode)
# ---------------------------------------------------------------------------
_HI = lax.Precision.HIGHEST


def _ln_ref(x, g, bta, eps=LN_EPS):
    mean = jnp.mean(x, axis=-1, keepdims=True)
    var = jnp.mean((x - mean) ** 2, axis=-1, keepdims=True)
    return (x - mean) / jnp.sqrt(var + eps) * g + bta


def _reference_embeddings(x, conv_w, conv_b, cls_token, pos_emb, patch_size):
    b = x.shape[0]
    hidden = conv_w.shape[0]
    y = lax.conv_general_dilated(
        x, conv_w, window_strides=(patch_size, patch_size), padding="VALID",
        dimension_numbers=("NCHW", "OIHW", "NCHW"), precision=_HI,
    ) + conv_b.reshape(1, -1, 1, 1)
    y = y.reshape(b, hidden, -1).transpose(0, 2, 1)
    cls = jnp.broadcast_to(cls_token, (b, 1, hidden))
    return jnp.concatenate([cls, y], axis=1) + pos_emb


def _reference_transformer(x, params, *, patch_size, num_heads):
    h = _reference_embeddings(x, params["conv_w"], params["conv_b"],
                              params["cls_token"], params["pos_emb"],
                              patch_size)
    b, s, hidden = h.shape
    nh = num_heads
    hd = hidden // nh
    for layer in params["layers"]:
        res = h
        xn = _ln_ref(h, layer["ln1_g"], layer["ln1_b"])
        hs = xn * layer["ci"]
        q = jnp.matmul(hs, layer["wq"].T, precision=_HI) + layer["bq"]
        k = jnp.matmul(hs, layer["wk"].T, precision=_HI) + layer["bk"]
        v = jnp.matmul(hs, layer["wv"].T, precision=_HI) + layer["bv"]
        q = q.reshape(b, s, nh, hd).transpose(0, 2, 1, 3)
        k = k.reshape(b, s, nh, hd).transpose(0, 2, 1, 3)
        v = v.reshape(b, s, nh, hd).transpose(0, 2, 1, 3)
        scores = jnp.matmul(q, k.transpose(0, 1, 3, 2),
                            precision=_HI) / math.sqrt(hd)
        probs = jax.nn.softmax(scores, axis=-1)
        ctx = jnp.matmul(probs, v, precision=_HI)
        ctx = ctx.transpose(0, 2, 1, 3).reshape(b, s, hidden)
        ctx = ctx * layer["cci"]
        attn_out = jnp.matmul(ctx, layer["wo"].T, precision=_HI) + layer["bo"]
        h = attn_out + res

        res = h
        xn = _ln_ref(h, layer["ln2_g"], layer["ln2_b"])
        m = jnp.matmul(xn * layer["mi1"], layer["w1"].T,
                       precision=_HI) + layer["b1"]
        m = jax.nn.gelu(m, approximate=False)
        m = jnp.matmul(m * layer["mi2"], layer["w2"].T,
                       precision=_HI) + layer["b2"]
        h = m + res
    return _ln_ref(h, params["encoder_norm_g"], params["encoder_norm_b"])


# ---------------------------------------------------------------------------
if __name__ == "__main__":
    B, C, IMG = 2, 3, 16
    patch_size = 4
    hidden = 32
    num_heads = 4
    mlp_dim = 64
    num_layers = 2
    n_patches = (IMG // patch_size) ** 2

    keys = iter(jax.random.split(jax.random.PRNGKey(0), 64))

    def rnd(shape, scale=0.1):
        return scale * jax.random.normal(next(keys), shape, dtype=jnp.float32)

    x = jax.random.normal(next(keys), (B, C, IMG, IMG), dtype=jnp.float32)
    params = {
        "conv_w": rnd((hidden, C, patch_size, patch_size)),
        "conv_b": rnd((hidden,)),
        "cls_token": rnd((1, 1, hidden)),
        "pos_emb": rnd((1, n_patches + 1, hidden)),
        "encoder_norm_g": 1.0 + rnd((hidden,)),
        "encoder_norm_b": rnd((hidden,)),
        "layers": [],
    }
    for _ in range(num_layers):
        params["layers"].append({
            "ln1_g": 1.0 + rnd((hidden,)), "ln1_b": rnd((hidden,)),
            "ln2_g": 1.0 + rnd((hidden,)), "ln2_b": rnd((hidden,)),
            "wq": rnd((hidden, hidden)), "bq": rnd((hidden,)),
            "wk": rnd((hidden, hidden)), "bk": rnd((hidden,)),
            "wv": rnd((hidden, hidden)), "bv": rnd((hidden,)),
            "wo": rnd((hidden, hidden)), "bo": rnd((hidden,)),
            "ci": jnp.ones((hidden,), jnp.float32),   # ChannelImportance (ones init)
            "cci": jnp.ones((hidden,), jnp.float32),
            "w1": rnd((mlp_dim, hidden)), "b1": rnd((mlp_dim,)),
            "w2": rnd((hidden, mlp_dim)), "b2": rnd((hidden,)),
            "mi1": jnp.ones((hidden,), jnp.float32),
            "mi2": jnp.ones((mlp_dim,), jnp.float32),
        })

    ref = _reference_transformer(x, params, patch_size=patch_size,
                                 num_heads=num_heads)

    # --- f32 MXU path: tight check against the pure-JAX reference ---------
    prep_f32 = prepare_params(params)
    out, attn_w = transformer_forward(x, prep_f32, patch_size=patch_size,
                                      num_heads=num_heads)
    out = jax.block_until_ready(out)
    assert out.shape == (B, n_patches + 1, hidden)
    assert attn_w == []
    assert jnp.allclose(out, ref, atol=1e-3, rtol=1e-3)

    # --- bf16 MXU path (f32 accumulate / epilogues): loosened tolerance ---
    prep_bf16 = prepare_params(params, matmul_dtype=jnp.bfloat16)
    out_bf16, _ = transformer_forward(x, prep_bf16, patch_size=patch_size,
                                      num_heads=num_heads,
                                      matmul_dtype=jnp.bfloat16)
    out_bf16 = jax.block_until_ready(out_bf16)
    assert out_bf16.shape == (B, n_patches + 1, hidden)
    assert bool(jnp.isfinite(out_bf16).all())
    assert jnp.allclose(out_bf16, ref, atol=2e-1, rtol=2e-1)

    print("KERNEL_OK")
</pallas_src>

<mosaic_0001>
module attributes {stable_mosaic.version = 11 : i64} {
  func.func @_patch_embed_kernel(%arg0: i32, %arg1: i32, %arg2: memref<1x16x48xf32, #tpu.memory_space<vmem>>, %arg3: memref<48x32xf32, #tpu.memory_space<vmem>>, %arg4: memref<1x16x32xf32, #tpu.memory_space<vmem>>, %arg5: memref<1x16x32xf32, #tpu.memory_space<vmem>>) attributes {dimension_semantics = [#tpu.dimension_semantics<parallel>, #tpu.dimension_semantics<parallel>], iteration_bounds = array<i64: 2, 1>, scalar_prefetch = 0 : i64, scratch_operands = 0 : i64, tpu.core_type = #tpu.core_type<tc>, window_params = [{transform_indices = @transform_0, window_bounds = array<i64: 1, 16, 48>}, {pipeline_mode = #tpu.pipeline_mode<synchronous>, transform_indices = @transform_1, window_bounds = array<i64: 48, 32>}, {transform_indices = @transform_2, window_bounds = array<i64: 1, 16, 32>}, {transform_indices = @transform_3, window_bounds = array<i64: 1, 16, 32>}]} {
    %c0 = arith.constant 0 : index
    %c0_0 = arith.constant 0 : index
    %c0_1 = arith.constant 0 : index
    %0 = vector.load %arg2[%c0, %c0_0, %c0_1] : memref<1x16x48xf32, #tpu.memory_space<vmem>>, vector<1x16x48xf32>
    %1 = vector.shape_cast %0 : vector<1x16x48xf32> to vector<16x48xf32>
    %c0_2 = arith.constant 0 : index
    %c0_3 = arith.constant 0 : index
    %2 = vector.load %arg3[%c0_2, %c0_3] : memref<48x32xf32, #tpu.memory_space<vmem>>, vector<48x32xf32>
    %cst = arith.constant dense<0.000000e+00> : vector<16x32xf32>
    %3 = tpu.matmul %1, %2, %cst {dimension_numbers = #tpu.dot_dimension_numbers<[1], [0], [0], [1], [0, 0, 1, 1], [], []>} : vector<16x48xf32>, vector<48x32xf32>, vector<16x32xf32> -> vector<16x32xf32>
    %c0_4 = arith.constant 0 : index
    %c0_5 = arith.constant 0 : index
    %c0_6 = arith.constant 0 : index
    %4 = vector.load %arg4[%c0_4, %c0_5, %c0_6] : memref<1x16x32xf32, #tpu.memory_space<vmem>>, vector<1x16x32xf32>
    %5 = vector.shape_cast %4 : vector<1x16x32xf32> to vector<16x32xf32>
    %6 = arith.addf %3, %5 : vector<16x32xf32>
    %c0_7 = arith.constant 0 : index
    %c0_8 = arith.constant 0 : index
    %c0_9 = arith.constant 0 : index
    %7 = vector.load %arg5[%c0_7, %c0_8, %c0_9] : memref<1x16x32xf32, #tpu.memory_space<vmem>>, vector<1x16x32xf32>
    %8 = vector.shape_cast %7 : vector<1x16x32xf32> to vector<16x32xf32>
    %9 = vector.shape_cast %6 : vector<16x32xf32> to vector<1x16x32xf32>
    tpu.vector_store %arg5[%c0_7, %c0_8, %c0_9], %9 {strides = array<i32>} : memref<1x16x32xf32, #tpu.memory_space<vmem>>, vector<1x16x32xf32>,
    return
  }
  func.func @transform_0(%arg0: i32, %arg1: i32) -> (i32, i32, i32) {
    %c0_i32 = arith.constant 0 : i32
    %c0_i32_0 = arith.constant 0 : i32
    return %arg0, %arg1, %c0_i32 : i32, i32, i32
  }
  func.func @transform_1(%arg0: i32, %arg1: i32) -> (i32, i32) {
    %c0_i32 = arith.constant 0 : i32
    %c0_i32_0 = arith.constant 0 : i32
    %c0_i32_1 = arith.constant 0 : i32
    return %c0_i32, %c0_i32_0 : i32, i32
  }
  func.func @transform_2(%arg0: i32, %arg1: i32) -> (i32, i32, i32) {
    %c0_i32 = arith.constant 0 : i32
    %c0_i32_0 = arith.constant 0 : i32
    %c0_i32_1 = arith.constant 0 : i32
    return %c0_i32, %arg1, %c0_i32_0 : i32, i32, i32
  }
  func.func @transform_3(%arg0: i32, %arg1: i32) -> (i32, i32, i32) {
    %c0_i32 = arith.constant 0 : i32
    %c0_i32_0 = arith.constant 0 : i32
    return %arg0, %arg1, %c0_i32 : i32, i32, i32
  }
}

</mosaic_0001>

<llo_original>
// kernel: tpu_custom_call.1
$region0: #{tpu_custom_call.1}
  #allocation0 [shape = 'u32[]', space=smem, size = 0x4, offset = 0x4, fixed_abs, tag = 'smem constant byte address 0x4 - core index']
  #allocation1 [shape = 'u32[144,128]{1,0:T(1,128)}', space=vmem, size = 0x12000, scoped, tag = 'internal scratch']
  %s0 = inlined_call_operand.vmem [shape: f32[2,16,48], index: 0, kind: input, shape index: {}]
  %s1 = inlined_call_operand.vmem [shape: f32[48,32], index: 1, kind: input, shape index: {}]
  %s2 = inlined_call_operand.vmem [shape: f32[1,16,32], index: 2, kind: input, shape index: {}]
  %s3 = inlined_call_operand.hbm [shape: f32[2,16,32], index: 3, kind: output, shape index: {}]
  %s4 = sld [smem:[#allocation0]]
  $region45: #{tpu_custom_call.1} parent=0
    _
  %s6 = ssub.s32 1, %s4
  %s7 = scalar_select 0, %s6, %s4
  $region1: #{tpu_custom_call.1} parent=0
    #allocation2 [shape = 'u8[16384]{0}', space=vmem, size = 0x4000, scoped, tag = 'output window, operand 0']
    #allocation3 [shape = 's32[2]{0}', space=sflag, size = 0x8, scoped, tag = 'scoped memory for tpu_custom_call.1']
    %8 = vsyncpa [#allocation3], 0
    %s9 = scalar_lea.sflag [#allocation3], 1
    %10 = vsyncpa %s9, 0
    loop: start=0, step=1, limit=4
    $region2: #{tpu_custom_call.1} parent=1 // loop_pre_header
      _
    $region3: #{tpu_custom_call.1} parent=1 // loop_header
      %s12 = sphi 0, %s16
      %p13 = scmp.ge.s32.totalorder %s12, 4
      %s19 = sphi 0, %s31
      %s20 = sphi 0, %s27
      %s21 = sphi 0, %s19
      %s22 = sphi 0, %s20
      %s23 = sphi 0, %s21
      %s24 = sphi 0, %s22
      %s36 = sphi 0, %s38
      %s39 = sphi 0, %s36
      %s40 = sphi 0, %s39
      %s56 = sphi 0, %s40
      %s60 = sphi 0, %s60
      %s62 = sphi 0, %s60
      %s63 = sphi 0, %s62
      %s77 = sphi 0, %s63
      %s83 = sphi 0, %s85
      %s86 = sphi 0, %s83
      %s87 = sphi 0, %s86
      %s103 = sphi 0, %s87
      %s111 = sphi 0, %s113
      %s114 = sphi 0, %s111
      %s115 = sphi 0, %s114
      %s131 = sphi 0, %s115
    $region4: #{tpu_custom_call.1} parent=1 // loop_header_branch
      %15 = sbr.rel (%p13) target = $region8
    $region5: #{tpu_custom_call.1} parent=1 // loop_body
      %s17 = ssub.s32 %s12, 1
      %s18 = ssub.s32 %s12, 2
      %s25 = sadd.s32 1, %s20
      %p26 = scmp.ge.s32.totalorder %s25, 1
      %s27 = scalar_select %p26, 0, %s25
      %s28 = sadd.s32 1, %s19
      %s29 = scalar_select %p26, %s28, %s19
      %p30 = scmp.ge.s32.totalorder %s29, 2
      %s31 = scalar_select %p30, 0, %s29
      %s32 = ssub.s32 %s19, %s31
      %s33 = ssub.s32 %s20, %s27
      %s34 = sor.u32 %s32, %s33
      %p35 = scmp.eq.s32.totalorder %s34, 0
      %s37 = sadd.s32 %s36, 1
      %s38 = scalar_select %p35, %s36, %s37
      %p41 = pneg %p35
      %p42 = scmp.eq.s32.totalorder %s12, 1
      %p43 = por %p41, %p42
      %p44 = scmp.ne.s32.totalorder %s36, %s39
      %p45 = scmp.eq.s32.totalorder %s12, 0
      %p46 = por %p44, %p45
      %p47 = scmp.ne.s32.totalorder %s36, %s39
      %p48 = scmp.eq.s32.totalorder %s17, 1
      %p49 = por %p47, %p48
      %p50 = scmp.ne.s32.totalorder %s39, %s40
      %p51 = scmp.eq.s32.totalorder %s17, 0
      %p52 = por %p50, %p51
      %p53 = scmp.ne.s32.totalorder %s39, %s40
      %p54 = scmp.eq.s32.totalorder %s18, 1
      %p55 = por %p53, %p54
      %p57 = scmp.ne.s32.totalorder %s40, %s56
      %p58 = scmp.eq.s32.totalorder %s18, 0
      %p59 = por %p57, %p58
      %s61 = sadd.s32 %s60, 1
      %p64 = scmp.eq.s32.totalorder %s12, 1
      %p65 = scmp.ne.s32.totalorder %s60, %s62
      %p66 = scmp.eq.s32.totalorder %s12, 0
      %p67 = por %p65, %p66
      %p68 = scmp.ne.s32.totalorder %s60, %s62
      %p69 = scmp.eq.s32.totalorder %s17, 1
      %p70 = por %p68, %p69
      %p71 = scmp.ne.s32.totalorder %s62, %s63
      %p72 = scmp.eq.s32.totalorder %s17, 0
      %p73 = por %p71, %p72
      %p74 = scmp.ne.s32.totalorder %s62, %s63
      %p75 = scmp.eq.s32.totalorder %s18, 1
      %p76 = por %p74, %p75
      %p78 = scmp.ne.s32.totalorder %s63, %s77
      %p79 = scmp.eq.s32.totalorder %s18, 0
      %p80 = por %p78, %p79
      %s81 = ssub.s32 %s20, %s27
      %p82 = scmp.eq.s32.totalorder %s81, 0
      %s84 = sadd.s32 %s83, 1
      %s85 = scalar_select %p82, %s83, %s84
      %p88 = pneg %p82
      %p89 = scmp.eq.s32.totalorder %s12, 1
      %p90 = por %p88, %p89
      %p91 = scmp.ne.s32.totalorder %s83, %s86
      %p92 = scmp.eq.s32.totalorder %s12, 0
      %p93 = por %p91, %p92
      %p94 = scmp.ne.s32.totalorder %s83, %s86
      %p95 = scmp.eq.s32.totalorder %s17, 1
      %p96 = por %p94, %p95
      %p97 = scmp.ne.s32.totalorder %s86, %s87
      %p98 = scmp.eq.s32.totalorder %s17, 0
      %p99 = por %p97, %p98
      %p100 = scmp.ne.s32.totalorder %s86, %s87
      %p101 = scmp.eq.s32.totalorder %s18, 1
      %p102 = por %p100, %p101
      %p104 = scmp.ne.s32.totalorder %s87, %s103
      %p105 = scmp.eq.s32.totalorder %s18, 0
      %p106 = por %p104, %p105
      %s107 = ssub.s32 %s19, %s31
      %s108 = ssub.s32 %s20, %s27
      %s109 = sor.u32 %s107, %s108
      %p110 = scmp.eq.s32.totalorder %s109, 0
      %s112 = sadd.s32 %s111, 1
      %s113 = scalar_select %p110, %s111, %s112
      %p116 = pneg %p110
      %p117 = scmp.eq.s32.totalorder %s12, 1
      %p118 = por %p116, %p117
      %p119 = scmp.ne.s32.totalorder %s111, %s114
      %p120 = scmp.eq.s32.totalorder %s12, 0
      %p121 = por %p119, %p120
      %p122 = scmp.ne.s32.totalorder %s111, %s114
      %p123 = scmp.eq.s32.totalorder %s17, 1
      %p124 = por %p122, %p123
      %p125 = scmp.ne.s32.totalorder %s114, %s115
      %p126 = scmp.eq.s32.totalorder %s17, 0
      %p127 = por %p125, %p126
      %p128 = scmp.ne.s32.totalorder %s114, %s115
      %p129 = scmp.eq.s32.totalorder %s18, 1
      %p130 = por %p128, %p129
      %p132 = scmp.ne.s32.totalorder %s115, %s131
      %p133 = scmp.eq.s32.totalorder %s18, 0
      %p134 = por %p132, %p133
      %p135 = scmp.le.s32.totalorder 1, %s12
      %p136 = scmp.lt.s32.totalorder %s12, 3
      %p137 = pnand %p135, %p136
      %p138 = pneg %p137
      // Predicated region
      $region9: #{tpu_custom_call.1} parent=5 // pred_check
        _
      $region10: #{tpu_custom_call.1} parent=5 // pred_check_branch
        %140 = sbr.rel (%p137) target = $region12
      $region11: #{tpu_custom_call.1} parent=5 // pred_region
        %s141 = ssub.s32 %s12, 1
        // Predicated region
        $region13: #{tpu_custom_call.1} parent=11 // pred_check
          %p142 = pneg %p73
        $region14: #{tpu_custom_call.1} parent=11 // pred_check_branch
          %144 = sbr.rel (%p142) target = $region16
        $region15: #{tpu_custom_call.1} parent=11 // pred_region
          _
        $region16: #{tpu_custom_call.1} parent=11 // pred_fallthru
          _
        // Predicated region
        $region17: #{tpu_custom_call.1} parent=11 // pred_check
          %p145 = pneg %p99
        $region18: #{tpu_custom_call.1} parent=11 // pred_check_branch
          %147 = sbr.rel (%p145) target = $region20
        $region19: #{tpu_custom_call.1} parent=11 // pred_region
          %s148 = smul.u32 2, %s22
          %p149 = scmp.lt.s32.totalorder %s148, 1
          %s150 = scalar_select %p149, %s148, 1
          %s151 = smul.addr %s150, 8
          %s152 = scalar_lea.vmem %s2, %s151
          %s153 = smul.u32 2, %s22
        $region20: #{tpu_custom_call.1} parent=11 // pred_fallthru
          _
      $region12: #{tpu_custom_call.1} parent=5 // pred_fallthru
        _
      %p154 = scmp.lt.s32.totalorder %s12, 2
      // Predicated region
      $region21: #{tpu_custom_call.1} parent=5 // pred_check
        %p155 = pneg %p154
      $region22: #{tpu_custom_call.1} parent=5 // pred_check_branch
        %157 = sbr.rel (%p155) target = $region24
      $region23: #{tpu_custom_call.1} parent=5 // pred_region
        // Predicated region
        $region25: #{tpu_custom_call.1} parent=23 // pred_check
          %p158 = pneg %p46
        $region26: #{tpu_custom_call.1} parent=23 // pred_check_branch
          %160 = sbr.rel (%p158) target = $region28
        $region27: #{tpu_custom_call.1} parent=23 // pred_region
          %s161 = smul.u32 2, %s20
          %p162 = scmp.lt.s32.totalorder %s19, 1
          %s163 = scalar_select %p162, %s19, 1
          %p164 = scmp.lt.s32.totalorder %s161, 1
          %s165 = scalar_select %p164, %s161, 1
          %s166 = smul.addr %s163, 2
          %s167 = sadd.s32 %s165, %s166
          %s168 = smul.addr %s167, 8
          %s169 = scalar_lea.vmem %s0, %s168
          %s170 = smul.u32 2, %s20
        $region28: #{tpu_custom_call.1} parent=23 // pred_fallthru
          _
      $region24: #{tpu_custom_call.1} parent=5 // pred_fallthru
        _
      %p171 = scmp.le.s32.totalorder 1, %s12
      %p172 = scmp.lt.s32.totalorder %s12, 3
      %p173 = pnand %p171, %p172
      %p174 = pneg %p173
      // Predicated region
      $region29: #{tpu_custom_call.1} parent=5 // pred_check
        _
      $region30: #{tpu_custom_call.1} parent=5 // pred_check_branch
        %176 = sbr.rel (%p173) target = $region32
      $region31: #{tpu_custom_call.1} parent=5 // pred_region
        %s177 = ssub.s32 %s12, 1
        %s178 = smul.u32 2, %s22
        %p179 = scmp.lt.s32.totalorder %s21, 1
        %s180 = scalar_select %p179, %s21, 1
        %p181 = scmp.lt.s32.totalorder %s178, 1
        %s182 = scalar_select %p181, %s178, 1
        %s183 = smul.addr %s180, 2
        %s184 = sadd.s32 %s182, %s183
        %s185 = smul.addr %s184, 8
        %s186 = scalar_lea.vmem %s0, %s185
        %p187 = pneg %p52
        %p188 = pneg %p49
        %p189 = pneg %p73
        %p190 = pneg %p70
        %s191 = smul.u32 2, %s22
        %p192 = scmp.lt.s32.totalorder %s191, 1
        %s193 = scalar_select %p192, %s191, 1
        %s194 = smul.addr %s193, 8
        %s195 = scalar_lea.vmem %s2, %s194
        %p196 = pneg %p99
        %p197 = pneg %p96
        %p198 = pneg %p127
        %p199 = pneg %p124
        %s200 = sand.u32 %s114, 1
        %s201 = scalar_lea.sflag [#allocation3], %s200
        %s202 = sand.u32 %s114, 1
        %s203 = smul.addr %s202, 16
        %s204 = scalar_lea.vmem [#allocation2], %s203
        %s205 = smul.u32 2, %s22
        %p206 = scmp.lt.s32.totalorder %s21, 1
        %s207 = scalar_select %p206, %s21, 1
        %p208 = scmp.lt.s32.totalorder %s205, 1
        %s209 = scalar_select %p208, %s205, 1
        %s210 = smul.addr %s207, 2
        %s211 = sadd.s32 %s209, %s210
        %s212 = smul.addr %s211, 8
        %s213 = scalar_lea.vmem %s0, %s212
        %s214 = smul.u32 2, %s22
        %s215 = smul.u32 2, %s22
        %p216 = scmp.lt.s32.totalorder %s215, 1
        %s217 = scalar_select %p216, %s215, 1
        %s218 = smul.addr %s217, 8
        %s219 = scalar_lea.vmem %s2, %s218
        %s220 = smul.u32 2, %s22
        %s221 = smul.u32 2, %s22
        %v222 = vld [vmem:[%s213] sm:$0xff]
        %v223 = vld [vmem:[%s213 + $0x8] sm:$0xff]
        %v224 = vld [vmem:[%s1] sm:$0xff]
        %v225 = vld [vmem:[%s1 + $0x8] sm:$0xff]
        %v226 = vld [vmem:[%s1 + $0x10] sm:$0xff]
        %v227 = vld [vmem:[%s1 + $0x18] sm:$0xff]
        %v228 = vld [vmem:[%s1 + $0x20] sm:$0xff]
        %v229 = vld [vmem:[%s1 + $0x28] sm:$0xff]
        %v230 = vld [vmem:[%s219] sm:$0xff]
        %v231 = vld [vmem:[%s219 + $0x8] sm:$0xff]
        %vm232 = vcmask 392192
        %v234 = vsel %vm232, %v222, 0
        %v237 = vsel %vm232, %v223, 0
        %239 = vmatprep.subr.mxu0 0.0
        %240 = vmatpush1.msra.mxu0 0.0
        %241 = vmatprep.subr.mxu0 0.0
        %242 = vmatpush1.msra.mxu0 0.0
        %243 = vmatprep.subr.mxu0 0.0
        %244 = vmatpush1.msra.mxu0 0.0
        %245 = vmatprep.subr.mxu0 0.0
        %246 = vmatpush1.msra.mxu0 0.0
        %247 = vmatprep.subr.mxu0 0.0
        %248 = vmatpush1.msra.mxu0 0.0
        %249 = vmatprep.subr.mxu0 0.0
        %250 = vmatpush1.msra.mxu0 0.0
        %251 = vmatprep.subr.mxu0 0.0
        %252 = vmatpush1.msra.mxu0 0.0
        %253 = vmatprep.subr.mxu0 0.0
        %254 = vmatpush1.msra.mxu0 0.0
        %255 = vmatprep.subr.mxu0 0.0
        %256 = vmatpush1.msra.mxu0 0.0
        %257 = vmatprep.subr.mxu0 0.0
        %258 = vmatpush1.msra.mxu0 0.0
        %259 = vmatprep.subr.mxu0 0.0
        %260 = vmatpush1.msra.mxu0 %v229
        %261 = vmatprep.subr.mxu0 0.0
        %262 = vmatpush1.msra.mxu0 %v228
        %263 = vmatprep.subr.mxu0 0.0
        %264 = vmatpush1.msra.mxu0 %v227
        %265 = vmatprep.subr.mxu0 0.0
        %266 = vmatpush1.msra.mxu0 %v226
        %267 = vmatprep.subr.mxu0 0.0
        %268 = vmatpush1.msra.mxu0 %v225
        %269 = vmatprep.subr.mxu0 0.0
        %270 = vmatpush1.msra.mxu0 %v224
        %271 = vmatprep.subr.mxu0 0.0
        %272 = vmatpush2.msra.mxu0 0.0
        %273 = vmatprep.subr.mxu0 0.0
        %274 = vmatpush2.msra.mxu0 0.0
        %275 = vmatprep.subr.mxu0 0.0
        %276 = vmatpush2.msra.mxu0 0.0
        %277 = vmatprep.subr.mxu0 0.0
        %278 = vmatpush2.msra.mxu0 0.0
        %279 = vmatprep.subr.mxu0 0.0
        %280 = vmatpush2.msra.mxu0 0.0
        %281 = vmatprep.subr.mxu0 0.0
        %282 = vmatpush2.msra.mxu0 0.0
        %283 = vmatprep.subr.mxu0 0.0
        %284 = vmatpush2.msra.mxu0 0.0
        %285 = vmatprep.subr.mxu0 0.0
        %286 = vmatpush2.msra.mxu0 0.0
        %287 = vmatprep.subr.mxu0 0.0
        %288 = vmatpush2.msra.mxu0 0.0
        %289 = vmatprep.subr.mxu0 0.0
        %290 = vmatpush2.msra.mxu0 0.0
        %291 = vmatprep.subr.mxu0 0.0
        %292 = vmatpush2.msra.mxu0 0.0
        %293 = vmatprep.subr.mxu0 0.0
        %294 = vmatpush2.msra.mxu0 0.0
        %295 = vmatprep.subr.mxu0 0.0
        %296 = vmatpush2.msra.mxu0 0.0
        %297 = vmatprep.subr.mxu0 0.0
        %298 = vmatpush2.msra.mxu0 0.0
        %299 = vmatprep.subr.mxu0 0.0
        %300 = vmatpush2.msra.mxu0 0.0
        %301 = vmatprep.subr.mxu0 0.0
        %302 = vmatpush2.msra.mxu0 0.0
        %303 = vmatprep.mubr.f32.mxu0 0.0
        %304 = vmatmul.mubr.f32.gmra.mxu0 %v234
        %v305 = vpop.f32.mrf.mxu0
        %v306 = vadd.f32 %v230, %v305
        %v307 = vpop.f32.mrf.mxu0
        %308 = vmatprep.mubr.f32.mxu0 0.0
        %309 = vmatmul.mubr.f32.gmra.mxu0 %v237
        %v310 = vpop.f32.mrf.mxu0
        %v311 = vadd.f32 %v231, %v310
        %v312 = vpop.f32.mrf.mxu0
        %313 = vdwg.mxu0
        %vm314 = vcmask 261120
        %315 = vst.msk [vmem:[%s204] sm:$0xff] %vm314, %v306
        %316 = vst.msk [vmem:[%s204 + $0x8] sm:$0xff] %vm314, %v311
        %s317 = sand.u32 %s114, 1
        %s318 = scalar_lea.sflag [#allocation3], %s317
        %s319 = sand.u32 %s114, 1
        %s320 = smul.addr %s319, 16
        %s321 = scalar_lea.vmem [#allocation2], %s320
        // Predicated region
        $region33: #{tpu_custom_call.1} parent=31 // pred_check
          %p322 = pneg %p124
        $region34: #{tpu_custom_call.1} parent=31 // pred_check_branch
          %324 = sbr.rel (%p322) target = $region36
        $region35: #{tpu_custom_call.1} parent=31 // pred_region
          %s325 = smul.u32 2, %s22
          %s327 = ssub.s32 256, 256
          %328 = vsyncadd %s318, %s327
          %s329 = smul.addr %s21, 2
          %s330 = sadd.s32 %s325, %s329
          %s331 = smul.addr %s330, 128
          %s332 = scalar_lea.hbm %s3, %s331
          %s333 = sshll.u32 %s321, 4
          %s334 = int_to_ptr.vmem [resolvable:$true] %s333
          %339 = dma.vmem_to_hbm [thread:$0]  %s334, 256, %s332, %s318, 128, 128, 8
        $region36: #{tpu_custom_call.1} parent=31 // pred_fallthru
          _
      $region32: #{tpu_custom_call.1} parent=5 // pred_fallthru
        _
      %p340 = scmp.le.s32.totalorder 2, %s12
      // Predicated region
      $region37: #{tpu_custom_call.1} parent=5 // pred_check
        %p341 = pneg %p340
      $region38: #{tpu_custom_call.1} parent=5 // pred_check_branch
        %343 = sbr.rel (%p341) target = $region40
      $region39: #{tpu_custom_call.1} parent=5 // pred_region
        %s344 = ssub.s32 %s12, 2
        // Predicated region
        $region41: #{tpu_custom_call.1} parent=39 // pred_check
          %p345 = pneg %p130
        $region42: #{tpu_custom_call.1} parent=39 // pred_check_branch
          %347 = sbr.rel (%p345) target = $region44
        $region43: #{tpu_custom_call.1} parent=39 // pred_region
          %s348 = sand.u32 %s115, 1
          %s349 = scalar_lea.sflag [#allocation3], %s348
          %s350 = sand.u32 %s115, 1
          %s351 = smul.addr %s350, 16
          %s352 = scalar_lea.vmem [#allocation2], %s351
          %353 = dma.done %s349, 256
        $region44: #{tpu_custom_call.1} parent=39 // pred_fallthru
          _
      $region40: #{tpu_custom_call.1} parent=5 // pred_fallthru
        _
    $region6: #{tpu_custom_call.1} parent=1 // loop_footer
      %s16 = sadd.s32 1, %s12
    $region7: #{tpu_custom_call.1} parent=1 // loop_footer_branch
      %11 = sbr.rel target = $region3
    $region8: #{tpu_custom_call.1} parent=1 // loop_exit
      _
    %354 = vsyncpa [#allocation3], 1
    %s355 = scalar_lea.sflag [#allocation3], 1
    %356 = vsyncpa %s355, 1

</llo_original>
